<compile_context>
chip_gen: v5e
topology: v5e:2x2
jax: 0.10.0
libtpu: 0.0.40
codegen_flags: <defaults>
</compile_context>

<pallas_src>
import functools

import numpy as np
import jax
import jax.numpy as jnp
from jax.experimental import pallas as pl
from jax.experimental.pallas import tpu as pltpu


# -----------------------------------------------------------------------------
# Pallas kernel: pairwise FFM cross + linear + sigmoid (batch along lanes)
# -----------------------------------------------------------------------------
def _ffm_kernel(bias_ref, left_ref, right_ref, lin_ref, out_ref):
    # bias_ref  : (1, 1)   float32  (SMEM scalar)
    # left_ref  : (P*D, TB) float32
    # right_ref : (P*D, TB) float32
    # lin_ref   : (F, TB)   float32
    # out_ref   : (1, TB)   float32
    prod = left_ref[...].astype(jnp.float32) * right_ref[...].astype(jnp.float32)
    cross = jnp.sum(prod, axis=0, keepdims=True)                    # (1, TB)
    lin = jnp.sum(lin_ref[...].astype(jnp.float32), axis=0, keepdims=True)  # (1, TB)
    logits = cross + lin + bias_ref[0, 0]                           # (1, TB)
    out_ref[...] = jax.nn.sigmoid(logits)


def ffm_forward_pallas(left_slab, right_slab, lin_slab, lin_bias, *, tb=128):
    PD, B = left_slab.shape
    F = lin_slab.shape[0]
    assert B % tb == 0, "batch must be padded to a multiple of the tile"
    grid = (B // tb,)
    out = pl.pallas_call(
        _ffm_kernel,
        out_shape=jax.ShapeDtypeStruct((1, B), jnp.float32),
        grid=grid,
        in_specs=[
            pl.BlockSpec(memory_space=pltpu.SMEM),        # bias scalar
            pl.BlockSpec((PD, tb), lambda t: (0, t)),     # left slab
            pl.BlockSpec((PD, tb), lambda t: (0, t)),     # right slab
            pl.BlockSpec((F, tb), lambda t: (0, t)),      # linear values
        ],
        out_specs=pl.BlockSpec((1, tb), lambda t: (0, t)),
        compiler_params=pltpu.CompilerParams(
            dimension_semantics=("parallel",),
            vmem_limit_bytes=32 * 1024 * 1024,
        ),
    )(lin_bias, left_slab, right_slab, lin_slab)
    return out  # (1, B)


# -----------------------------------------------------------------------------
# Parameter init (deterministic, matching the PyTorch module's shapes)
# -----------------------------------------------------------------------------
def init_params(key, field_dims, emd_dims):
    vocab = int(sum(field_dims))
    F = len(field_dims)
    keys = jax.random.split(key, F + 1)

    # FiledAwareFMCross: F embedding tables, each (vocab, emd_dims), xavier_uniform
    bound = float(np.sqrt(6.0 / (vocab + emd_dims)))
    emb_tables = jnp.stack([
        jax.random.uniform(keys[i], (vocab, emd_dims), jnp.float32, -bound, bound)
        for i in range(F)
    ])  # (F, vocab, D)

    # CategoryLinear: embedding (vocab, 1) + bias (1,)
    lin_bound = float(np.sqrt(6.0 / (vocab + 1)))
    lin_table = jax.random.uniform(keys[F], (vocab, 1), jnp.float32,
                                   -lin_bound, lin_bound)
    lin_bias = jnp.zeros((1, 1), jnp.float32)
    return emb_tables, lin_table, lin_bias


# -----------------------------------------------------------------------------
# Full forward: JAX glue (offset add + gathers + slab layout) + Pallas hot path
# -----------------------------------------------------------------------------
def ffm_forward(x, field_dims, emb_tables, lin_table, lin_bias, *, tb=128):
    # x: (B, F) int32 of per-field category indices
    B, F = x.shape
    D = emb_tables.shape[-1]
    offsets = jnp.asarray(
        np.concatenate([[0], np.cumsum(field_dims)[:-1]]), jnp.int32)
    idx = x + offsets[None, :]                       # (B, F)

    # Pad the batch to a multiple of the tile; index 0 is always a valid row.
    Bp = pl.cdiv(B, tb) * tb
    if Bp != B:
        idx = jnp.pad(idx, ((0, Bp - B), (0, 0)))

    # Field pairs i < j.
    pairs = [(i, j) for i in range(F - 1) for j in range(i + 1, F)]
    P = len(pairs)
    i_idx = np.array([p[0] for p in pairs], np.int32)   # (P,)
    j_idx = np.array([p[1] for p in pairs], np.int32)   # (P,)

    # left[p, b, :]  = Emb_{i_p}[idx[b, j_p]]
    # right[p, b, :] = Emb_{j_p}[idx[b, i_p]]
    left = emb_tables[i_idx[:, None], idx[:, j_idx].T, :]    # (P, Bp, D)
    right = emb_tables[j_idx[:, None], idx[:, i_idx].T, :]   # (P, Bp, D)

    # Lane-dense slabs: (P*D, Bp), batch along the lane axis.
    left_slab = jnp.transpose(left, (0, 2, 1)).reshape(P * D, Bp)
    left_slab = left_slab.astype(jnp.float32)
    right_slab = jnp.transpose(right, (0, 2, 1)).reshape(P * D, Bp)
    right_slab = right_slab.astype(jnp.float32)

    # Per-field linear values, (F, Bp).
    lin_slab = jnp.transpose(lin_table[idx, 0], (1, 0)).astype(jnp.float32)

    out = ffm_forward_pallas(left_slab, right_slab, lin_slab,
                             lin_bias.astype(jnp.float32), tb=tb)   # (1, Bp)
    return out[0, :B].reshape(B, 1)


# -----------------------------------------------------------------------------
# Pure-JAX reference (mirrors the PyTorch forward) for correctness checking
# -----------------------------------------------------------------------------
def ffm_reference(x, field_dims, emb_tables, lin_table, lin_bias):
    offsets = jnp.asarray(
        np.concatenate([[0], np.cumsum(field_dims)[:-1]]), jnp.int32)
    idx = x + offsets[None, :]
    F = len(field_dims)
    cross_emb = [emb_tables[i][idx] for i in range(F)]      # each (B, F, D)
    cross_val = []
    for i in range(F - 1):
        for j in range(i + 1, F):
            cross_val.append(cross_emb[i][:, j] * cross_emb[j][:, i])
    ans = jnp.stack(cross_val, axis=1)                      # (B, P, D)
    ffm = jnp.sum(jnp.sum(ans, axis=1), axis=1, keepdims=True)  # (B, 1)
    linear = jnp.sum(lin_table[idx, 0], axis=1, keepdims=True) + lin_bias[0]
    return jax.nn.sigmoid((linear + ffm).reshape(-1, 1))


if __name__ == "__main__":
    field_dims = (3, 4, 5, 4)   # F = 4 fields, total vocab = 16
    emd_dims = 8
    B = 8

    key = jax.random.PRNGKey(0)
    k_params, k_x = jax.random.split(key)
    emb_tables, lin_table, lin_bias = init_params(k_params, field_dims, emd_dims)

    # per-field categorical indices, each within its own field cardinality
    cols = []
    xkeys = jax.random.split(k_x, len(field_dims))
    for f, fd in enumerate(field_dims):
        cols.append(jax.random.randint(xkeys[f], (B,), 0, fd, jnp.int32))
    x = jnp.stack(cols, axis=1)   # (B, F) int32

    out = ffm_forward(x, field_dims, emb_tables, lin_table, lin_bias, tb=128)
    out = jax.block_until_ready(out)

    ref = ffm_reference(x, field_dims, emb_tables, lin_table, lin_bias)
    ref = jax.block_until_ready(ref)

    if not np.allclose(np.asarray(out), np.asarray(ref), rtol=1e-5, atol=1e-5):
        raise AssertionError("Pallas FFM output mismatch vs reference")

    print("KERNEL_OK")
</pallas_src>

<mosaic_0001>
module attributes {stable_mosaic.version = 11 : i64} {
  func.func @_ffm_kernel(%arg0: i32, %arg1: memref<1x1xf32, #tpu.memory_space<smem>>, %arg2: memref<48x128xf32, #tpu.memory_space<vmem>>, %arg3: memref<48x128xf32, #tpu.memory_space<vmem>>, %arg4: memref<4x128xf32, #tpu.memory_space<vmem>>, %arg5: memref<1x128xf32, #tpu.memory_space<vmem>>) attributes {dimension_semantics = [#tpu.dimension_semantics<parallel>], iteration_bounds = array<i64: 1>, scalar_prefetch = 0 : i64, scratch_operands = 0 : i64, tpu.core_type = #tpu.core_type<tc>, window_params = [{transform_indices = @transform_0, window_bounds = array<i64: 1, 1>}, {transform_indices = @transform_1, window_bounds = array<i64: 48, 128>}, {transform_indices = @transform_2, window_bounds = array<i64: 48, 128>}, {transform_indices = @transform_3, window_bounds = array<i64: 4, 128>}, {transform_indices = @transform_4, window_bounds = array<i64: 1, 128>}]} {
    %c0 = arith.constant 0 : index
    %c0_0 = arith.constant 0 : index
    %0 = vector.load %arg2[%c0, %c0_0] : memref<48x128xf32, #tpu.memory_space<vmem>>, vector<48x128xf32>
    %c0_1 = arith.constant 0 : index
    %c0_2 = arith.constant 0 : index
    %1 = vector.load %arg3[%c0_1, %c0_2] : memref<48x128xf32, #tpu.memory_space<vmem>>, vector<48x128xf32>
    %2 = arith.mulf %0, %1 : vector<48x128xf32>
    %cst = arith.constant dense<0.000000e+00> : vector<128xf32>
    %3 = vector.multi_reduction <add>, %2, %cst [0] : vector<48x128xf32> to vector<128xf32>
    %4 = vector.shape_cast %3 : vector<128xf32> to vector<1x128xf32>
    %c0_3 = arith.constant 0 : index
    %c0_4 = arith.constant 0 : index
    %5 = vector.load %arg4[%c0_3, %c0_4] : memref<4x128xf32, #tpu.memory_space<vmem>>, vector<4x128xf32>
    %cst_5 = arith.constant dense<0.000000e+00> : vector<128xf32>
    %6 = vector.multi_reduction <add>, %5, %cst_5 [0] : vector<4x128xf32> to vector<128xf32>
    %7 = vector.shape_cast %6 : vector<128xf32> to vector<1x128xf32>
    %8 = arith.addf %4, %7 : vector<1x128xf32>
    %c0_6 = arith.constant 0 : index
    %c0_7 = arith.constant 0 : index
    %9 = memref.load %arg1[%c0_6, %c0_7] : memref<1x1xf32, #tpu.memory_space<smem>>
    %10 = vector.broadcast %9 : f32 to vector<1x128xf32>
    %11 = arith.addf %8, %10 : vector<1x128xf32>
    %12 = arith.negf %11 : vector<1x128xf32>
    %13 = math.exp %12 : vector<1x128xf32>
    %cst_8 = arith.constant 1.000000e+00 : f32
    %14 = vector.broadcast %cst_8 : f32 to vector<1x128xf32>
    %15 = arith.addf %14, %13 : vector<1x128xf32>
    %16 = arith.divf %14, %15 : vector<1x128xf32>
    %c0_9 = arith.constant 0 : index
    %c0_10 = arith.constant 0 : index
    %17 = vector.load %arg5[%c0_9, %c0_10] : memref<1x128xf32, #tpu.memory_space<vmem>>, vector<1x128xf32>
    tpu.vector_store %arg5[%c0_9, %c0_10], %16 {strides = array<i32>} : memref<1x128xf32, #tpu.memory_space<vmem>>, vector<1x128xf32>,
    return
  }
  func.func @transform_0(%arg0: i32) -> (i32, i32) {
    %c0_i32 = arith.constant 0 : i32
    %c0_i32_0 = arith.constant 0 : i32
    %c0_i32_1 = arith.constant 0 : i32
    return %c0_i32, %c0_i32_0 : i32, i32
  }
  func.func @transform_1(%arg0: i32) -> (i32, i32) {
    %c0_i32 = arith.constant 0 : i32
    %c0_i32_0 = arith.constant 0 : i32
    return %c0_i32, %arg0 : i32, i32
  }
  func.func @transform_2(%arg0: i32) -> (i32, i32) {
    %c0_i32 = arith.constant 0 : i32
    %c0_i32_0 = arith.constant 0 : i32
    return %c0_i32, %arg0 : i32, i32
  }
  func.func @transform_3(%arg0: i32) -> (i32, i32) {
    %c0_i32 = arith.constant 0 : i32
    %c0_i32_0 = arith.constant 0 : i32
    return %c0_i32, %arg0 : i32, i32
  }
  func.func @transform_4(%arg0: i32) -> (i32, i32) {
    %c0_i32 = arith.constant 0 : i32
    %c0_i32_0 = arith.constant 0 : i32
    return %c0_i32, %arg0 : i32, i32
  }
}

</mosaic_0001>

<llo_original>
// kernel: tpu_custom_call.1
$region0: #{tpu_custom_call.1}
  #allocation0 [shape = 'u32[]', space=smem, size = 0x4, offset = 0x4, fixed_abs, tag = 'smem constant byte address 0x4 - core index']
  #allocation1 [shape = 'u32[72,128]{1,0:T(1,128)}', space=vmem, size = 0x9000, scoped, tag = 'internal scratch']
  #allocation2 [shape = 'f32[1,1]{1,0:T(1,128)S(6)}', space=smem, size = 0x200, scoped, tag = 'scoped memory for tpu_custom_call.1']
  %s0 = inlined_call_operand.<no memory space> [shape: f32[1,1], index: 0, kind: input, shape index: {}]
  %s1 = inlined_call_operand.hbm [shape: f32[48,128], index: 1, kind: input, shape index: {}]
  %s2 = inlined_call_operand.hbm [shape: f32[48,128], index: 2, kind: input, shape index: {}]
  %s3 = inlined_call_operand.hbm [shape: f32[4,128], index: 3, kind: input, shape index: {}]
  %s4 = inlined_call_operand.hbm [shape: f32[1,128], index: 4, kind: output, shape index: {}]
  %s5 = sld [smem:[#allocation0]]
  $region38: #{tpu_custom_call.1} parent=0
    _
  %s7 = ssub.s32 1, %s5
  %s8 = scalar_select 0, %s7, %s5
  %9 = sst [smem:[#allocation2]] %s0
  $region1: #{tpu_custom_call.1} parent=0
    #allocation3 [shape = 'u8[24576]{0}', space=vmem, size = 0x6000, scoped, tag = 'input window, operand 1, single buffered']
    #allocation4 [shape = 's32[1]{0}', space=sflag, size = 0x4, scoped, tag = 'scoped memory for tpu_custom_call.1']
    #allocation5 [shape = 's32[1]{0}', space=sflag, size = 0x4, scoped, tag = 'scoped memory for tpu_custom_call.1']
    #allocation6 [shape = 'u8[24576]{0}', space=vmem, size = 0x6000, scoped, tag = 'input window, operand 2, single buffered']
    #allocation7 [shape = 's32[1]{0}', space=sflag, size = 0x4, scoped, tag = 'scoped memory for tpu_custom_call.1']
    #allocation8 [shape = 'u8[2048]{0}', space=vmem, size = 0x800, scoped, tag = 'input window, operand 3, single buffered']
    #allocation9 [shape = 'u8[512]{0}', space=vmem, size = 0x400, scoped, tag = 'output window, operand 0, single buffered']
    %10 = vsyncpa [#allocation4], 0
    %11 = vsyncpa [#allocation7], 0
    %12 = vsyncpa [#allocation5], 0
    // Predicated region
    $region2: #{tpu_custom_call.1} parent=1 // pred_check
      _
    $region3: #{tpu_custom_call.1} parent=1 // pred_check_branch
      %14 = sbr.rel (0) target = $region5
    $region4: #{tpu_custom_call.1} parent=1 // pred_region
      _
    $region5: #{tpu_custom_call.1} parent=1 // pred_fallthru
      _
    // Predicated region
    $region6: #{tpu_custom_call.1} parent=1 // pred_check
      _
    $region7: #{tpu_custom_call.1} parent=1 // pred_check_branch
      %16 = sbr.rel (0) target = $region9
    $region8: #{tpu_custom_call.1} parent=1 // pred_region
      %18 = vsyncadd [#allocation4], 0
      %s19 = sshll.u32 %s1, 4
      %s20 = int_to_ptr.hbm [resolvable:$true] %s19
      %s21 = sshll.u32 [#allocation3], 4
      %s22 = int_to_ptr.vmem [resolvable:$true] %s21
      %27 = dma.hbm_to_vmem [thread:$0]  %s20, 768, %s22, [#allocation4], 128, 128, 8
    $region9: #{tpu_custom_call.1} parent=1 // pred_fallthru
      _
    // Predicated region
    $region10: #{tpu_custom_call.1} parent=1 // pred_check
      _
    $region11: #{tpu_custom_call.1} parent=1 // pred_check_branch
      %29 = sbr.rel (0) target = $region13
    $region12: #{tpu_custom_call.1} parent=1 // pred_region
      %31 = vsyncadd [#allocation7], 0
      %s32 = sshll.u32 %s2, 4
      %s33 = int_to_ptr.hbm [resolvable:$true] %s32
      %s34 = sshll.u32 [#allocation6], 4
      %s35 = int_to_ptr.vmem [resolvable:$true] %s34
      %40 = dma.hbm_to_vmem [thread:$0]  %s33, 768, %s35, [#allocation7], 128, 128, 8
    $region13: #{tpu_custom_call.1} parent=1 // pred_fallthru
      _
    // Predicated region
    $region14: #{tpu_custom_call.1} parent=1 // pred_check
      _
    $region15: #{tpu_custom_call.1} parent=1 // pred_check_branch
      %42 = sbr.rel (0) target = $region17
    $region16: #{tpu_custom_call.1} parent=1 // pred_region
      %44 = vsyncadd [#allocation7], 0
      %s46 = sshll.u32 %s3, 4
      %s47 = int_to_ptr.hbm [resolvable:$true] %s46
      %s48 = sshll.u32 [#allocation8], 4
      %s49 = int_to_ptr.vmem [resolvable:$true] %s48
      %51 = dma.hbm_to_vmem [thread:$0]  %s47, 64, %s49, [#allocation7]
    $region17: #{tpu_custom_call.1} parent=1 // pred_fallthru
      _
    // Predicated region
    $region18: #{tpu_custom_call.1} parent=1 // pred_check
      _
    $region19: #{tpu_custom_call.1} parent=1 // pred_check_branch
      %53 = sbr.rel (0) target = $region21
    $region20: #{tpu_custom_call.1} parent=1 // pred_region
      %55 = dma.done [#allocation4], 768
    $region21: #{tpu_custom_call.1} parent=1 // pred_fallthru
      _
    // Predicated region
    $region22: #{tpu_custom_call.1} parent=1 // pred_check
      _
    $region23: #{tpu_custom_call.1} parent=1 // pred_check_branch
      %57 = sbr.rel (0) target = $region25
    $region24: #{tpu_custom_call.1} parent=1 // pred_region
      %59 = dma.done [#allocation7], 768
    $region25: #{tpu_custom_call.1} parent=1 // pred_fallthru
      _
    // Predicated region
    $region26: #{tpu_custom_call.1} parent=1 // pred_check
      _
    $region27: #{tpu_custom_call.1} parent=1 // pred_check_branch
      %61 = sbr.rel (0) target = $region29
    $region28: #{tpu_custom_call.1} parent=1 // pred_region
      %63 = dma.done [#allocation7], 64
    $region29: #{tpu_custom_call.1} parent=1 // pred_fallthru
      _
    %v64 = vld [vmem:[#allocation3] sm:$0xff]
    %v65 = vld [vmem:[#allocation3 + $0x8] sm:$0xff]
    %v66 = vld [vmem:[#allocation3 + $0x10] sm:$0xff]
    %v67 = vld [vmem:[#allocation3 + $0x18] sm:$0xff]
    %v68 = vld [vmem:[#allocation3 + $0x20] sm:$0xff]
    %v69 = vld [vmem:[#allocation3 + $0x28] sm:$0xff]
    %v70 = vld [vmem:[#allocation6] sm:$0xff]
    %v71 = vld [vmem:[#allocation6 + $0x8] sm:$0xff]
    %v72 = vld [vmem:[#allocation6 + $0x10] sm:$0xff]
    %v73 = vld [vmem:[#allocation6 + $0x18] sm:$0xff]
    %v74 = vld [vmem:[#allocation6 + $0x20] sm:$0xff]
    %v75 = vld [vmem:[#allocation6 + $0x28] sm:$0xff]
    %v76 = vmul.f32 %v64, %v70
    %v77 = vmul.f32 %v65, %v71
    %v78 = vmul.f32 %v66, %v72
    %v79 = vmul.f32 %v67, %v73
    %v80 = vmul.f32 %v68, %v74
    %v81 = vmul.f32 %v69, %v75
    %v82 = vadd.f32 %v76, %v77
    %v83 = vadd.f32 %v82, %v78
    %v84 = vadd.f32 %v83, %v79
    %v85 = vadd.f32 %v84, %v80
    %v86 = vadd.f32 %v85, %v81
    %v87 = vrot.slane %v86, 4
    %v88 = vadd.f32 %v86, %v87
    %v89 = vrot.slane %v88, 2
    %v90 = vadd.f32 %v88, %v89
    %v91 = vrot.slane %v90, 1
    %v92 = vadd.f32 %v90, %v91
    %v93 = vld [vmem:[#allocation8] sm:$0xf]
    %vm94 = vcmask 1043456
    %v95 = vsel %vm94, %v93, 0.0
    %v96 = vrot.slane %v95, 4
    %v97 = vadd.f32 %v95, %v96
    %v98 = vrot.slane %v97, 2
    %v99 = vadd.f32 %v97, %v98
    %v100 = vrot.slane %v99, 1
    %v101 = vadd.f32 %v99, %v100
    %v102 = vadd.f32 %v92, %v101
    %s103 = sld [smem:[#allocation2]]
    %v104 = vstv %s103
    %v105 = vadd.f32 %v102, %v104
    %v106 = vxor.u32 %v105, 2147483648
    %v107 = vmul.f32 %v106, 1.442695
    %v108 = vpow.pop %v107
    %v109 = vadd.f32 %v108, 1.0
    %v110 = vrcp.pop %v109
    %v111 = vmul.f32 %v109, %v110
    %v112 = vsub.f32 1.0, %v111
    %v113 = vmul.f32 %v110, %v112
    %v114 = vadd.f32 %v110, %v113
    %vm115 = vweird.f32 %v109
    %vm116 = vweird.f32 %v110
    %vm117 = vmor %vm115, %vm116
    %v118 = vsel %vm117, %v110, %v114
    %v119 = vand.u32 2147483647, %v109
    %vm120 = vcmp.eq.f32.partialorder %v119, 8.507059e+37
    %v121 = vand.u32 %v109, 2147483648
    %v122 = vor.u32 1.1754944e-38, %v121
    %v123 = vsel %vm120, %v122, %v118
    %v124 = vmul.f32 1.0, %v123
    %125 = vst [vmem:[#allocation9] sm:$0x1] %v124
    // Predicated region
    $region30: #{tpu_custom_call.1} parent=1 // pred_check
      _
    $region31: #{tpu_custom_call.1} parent=1 // pred_check_branch
      %127 = sbr.rel (0) target = $region33
    $region32: #{tpu_custom_call.1} parent=1 // pred_region
      %129 = vsyncadd [#allocation5], 0
      %s131 = sshll.u32 [#allocation9], 4
      %s132 = int_to_ptr.vmem [resolvable:$true] %s131
      %s133 = sshll.u32 %s4, 4
      %s134 = int_to_ptr.hbm [resolvable:$true] %s133
      %136 = dma.vmem_to_hbm [thread:$0]  %s132, 16, %s134, [#allocation5]
    $region33: #{tpu_custom_call.1} parent=1 // pred_fallthru
      _
    // Predicated region
    $region34: #{tpu_custom_call.1} parent=1 // pred_check
      _
    $region35: #{tpu_custom_call.1} parent=1 // pred_check_branch
      %138 = sbr.rel (0) target = $region37
    $region36: #{tpu_custom_call.1} parent=1 // pred_region
      %140 = dma.done [#allocation5], 16
    $region37: #{tpu_custom_call.1} parent=1 // pred_fallthru
      _
    %141 = vsyncpa [#allocation4], 1
    %142 = vsyncpa [#allocation7], 1
    %143 = vsyncpa [#allocation5], 1

</llo_original>
